<compile_context>
chip_gen: v5e
topology: v5e:2x2
jax: 0.10.0
libtpu: 0.0.40
codegen_flags: <defaults>
</compile_context>

<pallas_src>
import math

import jax
import jax.numpy as jnp
import numpy as np
from jax.experimental import pallas as pl
from jax.experimental.pallas import tpu as pltpu


def _penc2d_kernel(xs_ref, ey_ref, o_ref):
    """Assemble one lane-dense (1, tx, tw) output tile.

    xs_ref: (tx, tw)  x-dependent channel half, already tiled to lane width
                      (block re-used across the inner batch grid axis)
    ey_ref: (1,  tw)  y-dependent channel half (broadcast along sublanes)
    o_ref : (1, tx, tw)
    """
    o_ref[...] = (xs_ref[...] + ey_ref[...])[None].astype(o_ref.dtype)


def positional_encoding_2d(tensor):
    """Pallas equivalent of PositionalEncoding2D.forward (no caching)."""
    if tensor.ndim != 4:
        raise RuntimeError("The input tensor has to be 4d!")
    batch, x_dim, y_dim, orig_ch = tensor.shape
    out_dtype = tensor.dtype

    channels = int(math.ceil(orig_ch / 4) * 2)

    # ---- tiny 1-D parameter math, done once in plain JAX (negligible) ------
    inv_freq = 1.0 / (
        10000.0 ** (jnp.arange(0, channels, 2, dtype=jnp.float32) / channels)
    )                                                       # (channels//2,)
    pos_x = jnp.linspace(-1.0, 1.0, x_dim, dtype=jnp.float32)
    pos_y = jnp.linspace(-1.0, 1.0, y_dim, dtype=jnp.float32)
    sin_inp_x = pos_x[:, None] * inv_freq[None, :]          # (X, C//2)
    sin_inp_y = pos_y[:, None] * inv_freq[None, :]          # (Y, C//2)
    emb_x = jnp.concatenate([jnp.sin(sin_inp_x), jnp.cos(sin_inp_x)], axis=-1)  # (X, C)
    emb_y = jnp.concatenate([jnp.sin(sin_inp_y), jnp.cos(sin_inp_y)], axis=-1)  # (Y, C)

    # Exact decomposition of the orig_ch output channels into an x-only part
    # and a y-only part (zero-padded so out[..., :] = ex[x] + ey[y] exactly),
    # cast to the output dtype up front so the kernel works at output width.
    cx = min(channels, orig_ch)                 # channels taken from emb_x
    cy = max(orig_ch - channels, 0)             # channels taken from emb_y
    ex = jnp.pad(emb_x[:, :cx], ((0, 0), (0, orig_ch - cx))).astype(out_dtype)  # (X, orig_ch)
    ey = jnp.pad(emb_y[:, :cy], ((0, 0), (orig_ch - cy, 0))).astype(out_dtype)  # (Y, orig_ch)

    W = y_dim * orig_ch
    # x-half pre-tiled to the full lane-dense width in the wrapper, so the
    # kernel never performs a sub-128-lane repeat (pure whole-vreg add+store).
    x_slab = jnp.tile(ex, (1, y_dim))            # (X, W)
    ey_flat = ey.reshape(1, W)                   # (1, W)

    # ---- tiling: lane-dense (batch, X, W) output ----------------------------
    itemsize = jnp.dtype(out_dtype).itemsize
    MAX_BLOCK_BYTES = 6 << 20    # ~6 MiB blocks; 4 double-buffers stay < 32 MiB

    # Lane tile: whole W unless even an 8-row block would blow the budget.
    if 8 * W * itemsize <= MAX_BLOCK_BYTES:
        tw = W
    else:
        tw = max(128, ((MAX_BLOCK_BYTES // (8 * itemsize)) // 128) * 128)
        tw = min(tw, W)

    # Sublane tile.
    rows = max(1, MAX_BLOCK_BYTES // max(tw * itemsize, 1))
    if rows >= x_dim:
        tx = x_dim
    else:
        tx = max(8, (rows // 8) * 8)

    n_x = -(-x_dim // tx)
    n_w = -(-W // tw)

    # v7x shards the parallel grid over its two TensorCores; make sure a
    # single-image call still exposes >= 2 blocks.
    if batch * n_x * n_w == 1 and x_dim > 8:
        tx = max(8, ((-(-x_dim // 2)) + 7) // 8 * 8)
        n_x = -(-x_dim // tx)

    block_bytes = tx * tw * itemsize
    vmem_limit = int(min(48 << 20, max(32 << 20, 4 * block_bytes + (4 << 20))))

    # batch innermost -> the x_slab block index is unchanged across consecutive
    # steps, so Pallas skips its re-fetch (slab read once per tile, not per batch).
    grid = (n_x, n_w, batch)

    out_flat = pl.pallas_call(
        _penc2d_kernel,
        out_shape=jax.ShapeDtypeStruct((batch, x_dim, W), out_dtype),
        grid=grid,
        in_specs=[
            pl.BlockSpec((tx, tw), lambda i, j, b: (i, j)),
            pl.BlockSpec((1, tw), lambda i, j, b: (0, j)),
        ],
        out_specs=pl.BlockSpec((1, tx, tw), lambda i, j, b: (b, i, j)),
        compiler_params=pltpu.CompilerParams(
            dimension_semantics=("parallel", "parallel", "parallel"),
            vmem_limit_bytes=vmem_limit),
        cost_estimate=pl.CostEstimate(
            flops=batch * x_dim * W,
            transcendentals=0,
            bytes_accessed=(batch + 1) * x_dim * W * itemsize),
    )(x_slab, ey_flat)

    # Free row-major reshape back to the module's (batch, x, y, ch) layout.
    return out_flat.reshape(batch, x_dim, y_dim, orig_ch)


def _reference_numpy(tensor):
    """Pure-numpy transcription of the PyTorch forward, for verification."""
    batch, X, Y, orig_ch = tensor.shape
    channels = int(np.ceil(orig_ch / 4) * 2)
    inv_freq = 1.0 / 10000.0 ** (np.arange(0, channels, 2, dtype=np.float32) / channels)
    pos_x = np.linspace(-1, 1, X, dtype=np.float32)
    pos_y = np.linspace(-1, 1, Y, dtype=np.float32)
    sin_inp_x = np.einsum("i,j->ij", pos_x, inv_freq)
    sin_inp_y = np.einsum("i,j->ij", pos_y, inv_freq)
    emb_x = np.concatenate([np.sin(sin_inp_x), np.cos(sin_inp_x)], axis=-1)[:, None, :]
    emb_y = np.concatenate([np.sin(sin_inp_y), np.cos(sin_inp_y)], axis=-1)
    emb = np.zeros((X, Y, channels * 2), dtype=np.asarray(tensor).dtype)
    emb[:, :, :channels] = emb_x
    emb[:, :, channels : 2 * channels] = emb_y
    return np.repeat(emb[None, :, :, :orig_ch], batch, axis=0)


if __name__ == "__main__":
    key = jax.random.PRNGKey(0)
    # (batch, x, y, ch) — channels-last as the module's forward expects.
    x = jax.random.normal(key, (2, 16, 16, 8), dtype=jnp.float32)

    out = positional_encoding_2d(x)
    out = jax.block_until_ready(out)

    ref = _reference_numpy(np.asarray(x))
    assert out.shape == x.shape and out.dtype == x.dtype
    np.testing.assert_allclose(np.asarray(out), ref, rtol=1e-5, atol=1e-5)

    print("KERNEL_OK")
</pallas_src>

<mosaic_0001>
module attributes {stable_mosaic.version = 11 : i64} {
  func.func @_penc2d_kernel(%arg0: i32, %arg1: i32, %arg2: i32, %arg3: memref<16x128xf32, #tpu.memory_space<vmem>>, %arg4: memref<1x128xf32, #tpu.memory_space<vmem>>, %arg5: memref<1x16x128xf32, #tpu.memory_space<vmem>>) attributes {dimension_semantics = [#tpu.dimension_semantics<parallel>, #tpu.dimension_semantics<parallel>, #tpu.dimension_semantics<parallel>], iteration_bounds = array<i64: 1, 1, 2>, scalar_prefetch = 0 : i64, scratch_operands = 0 : i64, tpu.core_type = #tpu.core_type<tc>, window_params = [{transform_indices = @transform_0, window_bounds = array<i64: 16, 128>}, {transform_indices = @transform_1, window_bounds = array<i64: 1, 128>}, {transform_indices = @transform_2, window_bounds = array<i64: 1, 16, 128>}]} {
    %c0 = arith.constant 0 : index
    %c0_0 = arith.constant 0 : index
    %0 = vector.load %arg3[%c0, %c0_0] : memref<16x128xf32, #tpu.memory_space<vmem>>, vector<16x128xf32>
    %c0_1 = arith.constant 0 : index
    %c0_2 = arith.constant 0 : index
    %1 = vector.load %arg4[%c0_1, %c0_2] : memref<1x128xf32, #tpu.memory_space<vmem>>, vector<1x128xf32>
    %2 = vector.broadcast %1 : vector<1x128xf32> to vector<16x128xf32>
    %3 = arith.addf %0, %2 : vector<16x128xf32>
    %4 = vector.shape_cast %3 : vector<16x128xf32> to vector<1x16x128xf32>
    %c0_3 = arith.constant 0 : index
    %c0_4 = arith.constant 0 : index
    %c0_5 = arith.constant 0 : index
    %5 = vector.load %arg5[%c0_3, %c0_4, %c0_5] : memref<1x16x128xf32, #tpu.memory_space<vmem>>, vector<1x16x128xf32>
    tpu.vector_store %arg5[%c0_3, %c0_4, %c0_5], %4 {strides = array<i32>} : memref<1x16x128xf32, #tpu.memory_space<vmem>>, vector<1x16x128xf32>,
    return
  }
  func.func @transform_0(%arg0: i32, %arg1: i32, %arg2: i32) -> (i32, i32) {
    %c0_i32 = arith.constant 0 : i32
    return %arg0, %arg1 : i32, i32
  }
  func.func @transform_1(%arg0: i32, %arg1: i32, %arg2: i32) -> (i32, i32) {
    %c0_i32 = arith.constant 0 : i32
    %c0_i32_0 = arith.constant 0 : i32
    return %c0_i32, %arg1 : i32, i32
  }
  func.func @transform_2(%arg0: i32, %arg1: i32, %arg2: i32) -> (i32, i32, i32) {
    %c0_i32 = arith.constant 0 : i32
    return %arg2, %arg0, %arg1 : i32, i32, i32
  }
}

</mosaic_0001>

<llo_original>
// kernel: tpu_custom_call.1
$region0: #{tpu_custom_call.1}
  #allocation0 [shape = 'u32[]', space=smem, size = 0x4, offset = 0x4, fixed_abs, tag = 'smem constant byte address 0x4 - core index']
  #allocation1 [shape = 'u32[72,128]{1,0:T(1,128)}', space=vmem, size = 0x9000, scoped, tag = 'internal scratch']
  %s0 = inlined_call_operand.hbm [shape: f32[16,128], index: 0, kind: input, shape index: {}]
  %s1 = inlined_call_operand.hbm [shape: f32[1,128], index: 1, kind: input, shape index: {}]
  %s2 = inlined_call_operand.hbm [shape: f32[2,16,128], index: 2, kind: output, shape index: {}]
  %s3 = sld [smem:[#allocation0]]
  $region49: #{tpu_custom_call.1} parent=0
    _
  %s5 = ssub.s32 1, %s3
  %s6 = scalar_select 0, %s5, %s3
  $region1: #{tpu_custom_call.1} parent=0
    #allocation2 [shape = 'u8[8192]{0}', space=vmem, size = 0x2000, scoped, tag = 'input window, operand 0, single buffered']
    #allocation3 [shape = 's32[2]{0}', space=sflag, size = 0x8, scoped, tag = 'scoped memory for tpu_custom_call.1']
    #allocation4 [shape = 's32[2]{0}', space=sflag, size = 0x8, scoped, tag = 'scoped memory for tpu_custom_call.1']
    #allocation5 [shape = 'u8[512]{0}', space=vmem, size = 0x400, scoped, tag = 'input window, operand 1, single buffered']
    #allocation6 [shape = 's32[1]{0}', space=sflag, size = 0x4, scoped, tag = 'scoped memory for tpu_custom_call.1']
    #allocation7 [shape = 'u8[16384]{0}', space=vmem, size = 0x4000, scoped, tag = 'output window, operand 0']
    %7 = vsyncpa [#allocation3], 0
    %8 = vsyncpa [#allocation6], 0
    %9 = vsyncpa [#allocation4], 0
    %s10 = scalar_lea.sflag [#allocation4], 1
    %11 = vsyncpa %s10, 0
    loop: start=0, step=1, limit=4
    $region2: #{tpu_custom_call.1} parent=1 // loop_pre_header
      _
    $region3: #{tpu_custom_call.1} parent=1 // loop_header
      %s13 = sphi 0, %s17
      %p14 = scmp.ge.s32.totalorder %s13, 4
      %s20 = sphi 0, %s39
      %s21 = sphi 0, %s35
      %s22 = sphi 0, %s31
      %s23 = sphi 0, %s20
      %s24 = sphi 0, %s21
      %s25 = sphi 0, %s22
      %s26 = sphi 0, %s23
      %s27 = sphi 0, %s24
      %s28 = sphi 0, %s25
      %s44 = sphi 0, %s46
      %s47 = sphi 0, %s44
      %s48 = sphi 0, %s47
      %s64 = sphi 0, %s48
      %s70 = sphi 0, %s72
      %s73 = sphi 0, %s70
      %s74 = sphi 0, %s73
      %s90 = sphi 0, %s74
      %s100 = sphi 0, %s102
      %s103 = sphi 0, %s100
      %s104 = sphi 0, %s103
      %s120 = sphi 0, %s104
    $region4: #{tpu_custom_call.1} parent=1 // loop_header_branch
      %16 = sbr.rel (%p14) target = $region8
    $region5: #{tpu_custom_call.1} parent=1 // loop_body
      %s18 = ssub.s32 %s13, 1
      %s19 = ssub.s32 %s13, 2
      %s29 = sadd.s32 1, %s22
      %p30 = scmp.ge.s32.totalorder %s29, 2
      %s31 = scalar_select %p30, 0, %s29
      %s32 = sadd.s32 1, %s21
      %s33 = scalar_select %p30, %s32, %s21
      %p34 = scmp.ge.s32.totalorder %s33, 1
      %s35 = scalar_select %p34, 0, %s33
      %s36 = sadd.s32 1, %s20
      %s37 = scalar_select %p34, %s36, %s20
      %p38 = scmp.ge.s32.totalorder %s37, 1
      %s39 = scalar_select %p38, 0, %s37
      %s40 = ssub.s32 %s20, %s39
      %s41 = ssub.s32 %s21, %s35
      %s42 = sor.u32 %s40, %s41
      %p43 = scmp.eq.s32.totalorder %s42, 0
      %s45 = sadd.s32 %s44, 1
      %s46 = scalar_select %p43, %s44, %s45
      %p49 = pneg %p43
      %p50 = scmp.eq.s32.totalorder %s13, 1
      %p51 = por %p49, %p50
      %p52 = scmp.ne.s32.totalorder %s44, %s47
      %p53 = scmp.eq.s32.totalorder %s13, 0
      %p54 = por %p52, %p53
      %p55 = scmp.ne.s32.totalorder %s44, %s47
      %p56 = scmp.eq.s32.totalorder %s18, 1
      %p57 = por %p55, %p56
      %p58 = scmp.ne.s32.totalorder %s47, %s48
      %p59 = scmp.eq.s32.totalorder %s18, 0
      %p60 = por %p58, %p59
      %p61 = scmp.ne.s32.totalorder %s47, %s48
      %p62 = scmp.eq.s32.totalorder %s19, 1
      %p63 = por %p61, %p62
      %p65 = scmp.ne.s32.totalorder %s48, %s64
      %p66 = scmp.eq.s32.totalorder %s19, 0
      %p67 = por %p65, %p66
      %s68 = ssub.s32 %s21, %s35
      %p69 = scmp.eq.s32.totalorder %s68, 0
      %s71 = sadd.s32 %s70, 1
      %s72 = scalar_select %p69, %s70, %s71
      %p75 = pneg %p69
      %p76 = scmp.eq.s32.totalorder %s13, 1
      %p77 = por %p75, %p76
      %p78 = scmp.ne.s32.totalorder %s70, %s73
      %p79 = scmp.eq.s32.totalorder %s13, 0
      %p80 = por %p78, %p79
      %p81 = scmp.ne.s32.totalorder %s70, %s73
      %p82 = scmp.eq.s32.totalorder %s18, 1
      %p83 = por %p81, %p82
      %p84 = scmp.ne.s32.totalorder %s73, %s74
      %p85 = scmp.eq.s32.totalorder %s18, 0
      %p86 = por %p84, %p85
      %p87 = scmp.ne.s32.totalorder %s73, %s74
      %p88 = scmp.eq.s32.totalorder %s19, 1
      %p89 = por %p87, %p88
      %p91 = scmp.ne.s32.totalorder %s74, %s90
      %p92 = scmp.eq.s32.totalorder %s19, 0
      %p93 = por %p91, %p92
      %s94 = ssub.s32 %s22, %s31
      %s95 = ssub.s32 %s20, %s39
      %s96 = sor.u32 %s94, %s95
      %s97 = ssub.s32 %s21, %s35
      %s98 = sor.u32 %s96, %s97
      %p99 = scmp.eq.s32.totalorder %s98, 0
      %s101 = sadd.s32 %s100, 1
      %s102 = scalar_select %p99, %s100, %s101
      %p105 = pneg %p99
      %p106 = scmp.eq.s32.totalorder %s13, 1
      %p107 = por %p105, %p106
      %p108 = scmp.ne.s32.totalorder %s100, %s103
      %p109 = scmp.eq.s32.totalorder %s13, 0
      %p110 = por %p108, %p109
      %p111 = scmp.ne.s32.totalorder %s100, %s103
      %p112 = scmp.eq.s32.totalorder %s18, 1
      %p113 = por %p111, %p112
      %p114 = scmp.ne.s32.totalorder %s103, %s104
      %p115 = scmp.eq.s32.totalorder %s18, 0
      %p116 = por %p114, %p115
      %p117 = scmp.ne.s32.totalorder %s103, %s104
      %p118 = scmp.eq.s32.totalorder %s19, 1
      %p119 = por %p117, %p118
      %p121 = scmp.ne.s32.totalorder %s104, %s120
      %p122 = scmp.eq.s32.totalorder %s19, 0
      %p123 = por %p121, %p122
      %p124 = scmp.le.s32.totalorder 1, %s13
      %p125 = scmp.lt.s32.totalorder %s13, 3
      %p126 = pnand %p124, %p125
      %p127 = pneg %p126
      // Predicated region
      $region9: #{tpu_custom_call.1} parent=5 // pred_check
        _
      $region10: #{tpu_custom_call.1} parent=5 // pred_check_branch
        %129 = sbr.rel (%p126) target = $region12
      $region11: #{tpu_custom_call.1} parent=5 // pred_region
        %s130 = ssub.s32 %s13, 1
        // Predicated region
        $region13: #{tpu_custom_call.1} parent=11 // pred_check
          %p131 = pneg %p60
        $region14: #{tpu_custom_call.1} parent=11 // pred_check_branch
          %133 = sbr.rel (%p131) target = $region16
        $region15: #{tpu_custom_call.1} parent=11 // pred_region
          %s134 = smul.u32 2, %s23
          %136 = vsyncadd [#allocation3], 0
          %s137 = sadd.s32 %s24, %s134
          %s138 = smul.addr %s137, 8
          %s139 = scalar_lea.hbm %s0, %s138
          %s140 = sshll.u32 %s139, 4
          %s141 = int_to_ptr.hbm [resolvable:$true] %s140
          %s142 = sshll.u32 [#allocation2], 4
          %s143 = int_to_ptr.vmem [resolvable:$true] %s142
          %148 = dma.hbm_to_vmem [thread:$0]  %s141, 256, %s143, [#allocation3], 128, 128, 8
        $region16: #{tpu_custom_call.1} parent=11 // pred_fallthru
          _
        // Predicated region
        $region17: #{tpu_custom_call.1} parent=11 // pred_check
          %p149 = pneg %p86
        $region18: #{tpu_custom_call.1} parent=11 // pred_check_branch
          %151 = sbr.rel (%p149) target = $region20
        $region19: #{tpu_custom_call.1} parent=11 // pred_region
          %153 = vsyncadd [#allocation6], 0
          %s154 = scalar_lea.hbm %s1, %s24
          %s156 = sshll.u32 %s154, 4
          %s157 = int_to_ptr.hbm [resolvable:$true] %s156
          %s158 = sshll.u32 [#allocation5], 4
          %s159 = int_to_ptr.vmem [resolvable:$true] %s158
          %161 = dma.hbm_to_vmem [thread:$0]  %s157, 16, %s159, [#allocation6]
        $region20: #{tpu_custom_call.1} parent=11 // pred_fallthru
          _
      $region12: #{tpu_custom_call.1} parent=5 // pred_fallthru
        _
      %p162 = scmp.lt.s32.totalorder %s13, 2
      // Predicated region
      $region21: #{tpu_custom_call.1} parent=5 // pred_check
        %p163 = pneg %p162
      $region22: #{tpu_custom_call.1} parent=5 // pred_check_branch
        %165 = sbr.rel (%p163) target = $region24
      $region23: #{tpu_custom_call.1} parent=5 // pred_region
        _
      $region24: #{tpu_custom_call.1} parent=5 // pred_fallthru
        _
      %p166 = scmp.le.s32.totalorder 1, %s13
      %p167 = scmp.lt.s32.totalorder %s13, 3
      %p168 = pnand %p166, %p167
      %p169 = pneg %p168
      // Predicated region
      $region25: #{tpu_custom_call.1} parent=5 // pred_check
        _
      $region26: #{tpu_custom_call.1} parent=5 // pred_check_branch
        %171 = sbr.rel (%p168) target = $region28
      $region27: #{tpu_custom_call.1} parent=5 // pred_region
        %s172 = ssub.s32 %s13, 1
        // Predicated region
        $region29: #{tpu_custom_call.1} parent=27 // pred_check
          %p173 = pneg %p60
        $region30: #{tpu_custom_call.1} parent=27 // pred_check_branch
          %175 = sbr.rel (%p173) target = $region32
        $region31: #{tpu_custom_call.1} parent=27 // pred_region
          %177 = dma.done [#allocation3], 256
        $region32: #{tpu_custom_call.1} parent=27 // pred_fallthru
          _
        // Predicated region
        $region33: #{tpu_custom_call.1} parent=27 // pred_check
          %p178 = pneg %p86
        $region34: #{tpu_custom_call.1} parent=27 // pred_check_branch
          %180 = sbr.rel (%p178) target = $region36
        $region35: #{tpu_custom_call.1} parent=27 // pred_region
          %182 = dma.done [#allocation6], 16
        $region36: #{tpu_custom_call.1} parent=27 // pred_fallthru
          _
        %p183 = pneg %p60
        %p184 = pneg %p57
        %p185 = pneg %p86
        %p186 = pneg %p83
        %p187 = pneg %p116
        %p188 = pneg %p113
        %s189 = sand.u32 %s103, 1
        %s190 = scalar_lea.sflag [#allocation4], %s189
        %s191 = sand.u32 %s103, 1
        %s192 = smul.addr %s191, 16
        %s193 = scalar_lea.vmem [#allocation7], %s192
        %s194 = smul.u32 2, %s23
        %s195 = smul.u32 2, %s23
        %v196 = vld [vmem:[#allocation2] sm:$0xff]
        %v197 = vld [vmem:[#allocation2 + $0x8] sm:$0xff]
        %v198 = vld [vmem:[#allocation5] sm:$0x1]
        %v200 = vperm.slane %v198, 0
        %v202 = vadd.f32 %v196, %v200
        %v203 = vadd.f32 %v197, %v200
        %204 = vst [vmem:[%s193] sm:$0xff] %v202
        %205 = vst [vmem:[%s193 + $0x8] sm:$0xff] %v203
        %s206 = sand.u32 %s103, 1
        %s207 = scalar_lea.sflag [#allocation4], %s206
        %s208 = sand.u32 %s103, 1
        %s209 = smul.addr %s208, 16
        %s210 = scalar_lea.vmem [#allocation7], %s209
        // Predicated region
        $region37: #{tpu_custom_call.1} parent=27 // pred_check
          %p211 = pneg %p113
        $region38: #{tpu_custom_call.1} parent=27 // pred_check_branch
          %213 = sbr.rel (%p211) target = $region40
        $region39: #{tpu_custom_call.1} parent=27 // pred_region
          %s214 = smul.u32 2, %s23
          %216 = vsyncadd %s207, 0
          %s217 = sadd.s32 %s24, %s214
          %s218 = smul.addr %s25, 2
          %s219 = sadd.s32 %s217, %s218
          %s220 = smul.addr %s219, 8
          %s221 = scalar_lea.hbm %s2, %s220
          %s222 = sshll.u32 %s210, 4
          %s223 = int_to_ptr.vmem [resolvable:$true] %s222
          %s224 = sshll.u32 %s221, 4
          %s225 = int_to_ptr.hbm [resolvable:$true] %s224
          %230 = dma.vmem_to_hbm [thread:$0]  %s223, 256, %s225, %s207, 128, 128, 8
        $region40: #{tpu_custom_call.1} parent=27 // pred_fallthru
          _
      $region28: #{tpu_custom_call.1} parent=5 // pred_fallthru
        _
      %p231 = scmp.le.s32.totalorder 2, %s13
      // Predicated region
      $region41: #{tpu_custom_call.1} parent=5 // pred_check
        %p232 = pneg %p231
      $region42: #{tpu_custom_call.1} parent=5 // pred_check_branch
        %234 = sbr.rel (%p232) target = $region44
      $region43: #{tpu_custom_call.1} parent=5 // pred_region
        %s235 = ssub.s32 %s13, 2
        // Predicated region
        $region45: #{tpu_custom_call.1} parent=43 // pred_check
          %p236 = pneg %p119
        $region46: #{tpu_custom_call.1} parent=43 // pred_check_branch
          %238 = sbr.rel (%p236) target = $region48
        $region47: #{tpu_custom_call.1} parent=43 // pred_region
          %s239 = sand.u32 %s104, 1
          %s240 = scalar_lea.sflag [#allocation4], %s239
          %s241 = sand.u32 %s104, 1
          %s242 = smul.addr %s241, 16
          %s243 = scalar_lea.vmem [#allocation7], %s242
          %245 = dma.done %s240, 256
        $region48: #{tpu_custom_call.1} parent=43 // pred_fallthru
          _
      $region44: #{tpu_custom_call.1} parent=5 // pred_fallthru
        _
    $region6: #{tpu_custom_call.1} parent=1 // loop_footer
      %s17 = sadd.s32 1, %s13
    $region7: #{tpu_custom_call.1} parent=1 // loop_footer_branch
      %12 = sbr.rel target = $region3
    $region8: #{tpu_custom_call.1} parent=1 // loop_exit
      _
    %246 = vsyncpa [#allocation3], 1
    %s247 = scalar_lea.sflag [#allocation3], 1
    %248 = vsyncpa %s247, 1
    %249 = vsyncpa [#allocation6], 1
    %250 = vsyncpa [#allocation4], 1
    %s251 = scalar_lea.sflag [#allocation4], 1
    %252 = vsyncpa %s251, 1

</llo_original>
